<compile_context>
chip_gen: v7x
topology: tpu7x:2x2x1
jax: 0.10.0
libtpu: 0.0.40
codegen_flags: <defaults>
</compile_context>

<pallas_src>
import functools

import jax
import jax.numpy as jnp
from jax.experimental import pallas as pl
from jax.experimental.pallas import tpu as pltpu


def _round_up(n, m):
    return ((n + m - 1) // m) * m


def regression_net_kernel(x_ref, w_ref, b2_ref, o_ref):
    # x_ref : (1, T)      lane-dense batch tile
    # w_ref : (H_pad, 3)  packed, pre-folded weights: [0.5*w1 | 0.5*b1 | 0.5*w2]
    #                     (rows >= H are all zero)
    # b2_ref: (1, 1)      folded fc2 bias (SMEM scalar): b2 + 0.5*sum(w2)
    # o_ref : (1, T)      lane-dense output tile
    x = x_ref[...]                      # (1, T)
    w1 = w_ref[:, 0:1]                  # (H_pad, 1)
    b1 = w_ref[:, 1:2]                  # (H_pad, 1)
    w2 = w_ref[:, 2:3]                  # (H_pad, 1)

    # fc1 (+ folded sigmoid scale): VPU broadcast (H_pad,1)*(1,T)+(H_pad,1),
    # then a single EUP tanh.  sigmoid(z) == 0.5*tanh(z/2) + 0.5, with the 0.5s
    # folded into w1/b1/w2/b2 host-side.
    t = jnp.tanh(w1 * x + b1)                                   # (H_pad, T)
    # fc2: weighted XLU sublane reduction over H (padded rows contribute 0).
    y = jnp.sum(w2 * t, axis=0, keepdims=True) + b2_ref[0, 0]   # (1, T)

    o_ref[...] = y.astype(o_ref.dtype)


def pack_params(w1, b1, w2, b2):
    """Fold the sigmoid affine constants into torch-layout params and pack the
    three per-hidden-unit vectors into one sublane-padded (H_pad, 3) array.

    torch layouts: w1 (H,1), b1 (H,), w2 (1,H), b2 (1,)."""
    h = w1.shape[0]
    h_pad = _round_up(h, 8)
    packed = jnp.zeros((h_pad, 3), jnp.float32)
    packed = (packed
              .at[:h, 0].set(0.5 * w1[:, 0])
              .at[:h, 1].set(0.5 * b1)
              .at[:h, 2].set(0.5 * w2[0, :]))
    b2_folded = jnp.reshape(b2[0] + 0.5 * jnp.sum(w2), (1, 1)).astype(jnp.float32)
    return packed, b2_folded


def _choose_tiling(n, max_tile):
    """Pick (n_pad, tile): tile derived from the batch, >=2 (even) grid steps
    when the batch allows (v7x megacore), tile capped at max_tile lanes."""
    n_pad = _round_up(max(n, 1), 128)
    steps = max(pl.cdiv(n_pad, max_tile), 1)
    if n_pad >= 2 * 128:
        steps = max(steps, 2)
    if steps > 1 and steps % 2 == 1:
        steps += 1                      # even tile count for 2-TC sharding
    tile = _round_up(pl.cdiv(n_pad, steps), 128)
    n_pad = _round_up(n_pad, tile)
    return n_pad, tile


def _jax_reference(x, w1, b1, w2, b2):
    hdn = jax.nn.sigmoid(x @ w1.T + b1)     # (N, H)
    return hdn @ w2.T + b2                  # (N, 1)


@functools.partial(jax.jit, static_argnames=("max_tile", "min_pallas_batch"))
def regression_net_forward(x, w1, b1, w2, b2, *, max_tile=16384,
                           min_pallas_batch=256):
    """x: (N, 1) f32. Torch-layout params: w1 (H,1), b1 (H,), w2 (1,H), b2 (1,).
    Returns (N, 1) f32."""
    n = x.shape[0]

    # Small-batch fallback: below ~2 lane tiles the Pallas path is pure launch
    # + padding overhead; plain XLA wins.
    if n < min_pallas_batch:
        return _jax_reference(x, w1, b1, w2, b2)

    packed_w, b2_folded = pack_params(w1, b1, w2, b2)
    h_pad = packed_w.shape[0]

    n_pad, tile = _choose_tiling(n, max_tile)

    # (N,1) -> (1,N) is a free reshape of a contiguous array; pad only the tail.
    x_rows = x.reshape(1, n).astype(jnp.float32)
    if n_pad > n:
        x_rows = jnp.pad(x_rows, ((0, 0), (0, n_pad - n)))

    grid = (n_pad // tile,)
    y_rows = pl.pallas_call(
        regression_net_kernel,
        out_shape=jax.ShapeDtypeStruct((1, n_pad), jnp.float32),
        grid=grid,
        in_specs=[
            pl.BlockSpec((1, tile), lambda i: (0, i)),            # x: streamed
            pl.BlockSpec((h_pad, 3), lambda i: (0, 0)),           # weights: resident
            pl.BlockSpec(memory_space=pltpu.MemorySpace.SMEM),    # folded b2 scalar
        ],
        out_specs=pl.BlockSpec((1, tile), lambda i: (0, i)),
        compiler_params=pltpu.CompilerParams(
            dimension_semantics=("parallel",),
        ),
    )(x_rows, packed_w, b2_folded)

    if n_pad > n:
        y_rows = y_rows[:, :n]
    return y_rows.reshape(n, 1)


def init_params(key, n_hidden_neurons):
    """Deterministic init mimicking torch.nn.Linear, in torch layouts."""
    k1, k2, k3, k4 = jax.random.split(key, 4)
    bound1 = 1.0  # 1/sqrt(in_features=1)
    w1 = jax.random.uniform(k1, (n_hidden_neurons, 1), jnp.float32, -bound1, bound1)
    b1 = jax.random.uniform(k2, (n_hidden_neurons,), jnp.float32, -bound1, bound1)
    bound2 = 1.0 / float(n_hidden_neurons) ** 0.5
    w2 = jax.random.uniform(k3, (1, n_hidden_neurons), jnp.float32, -bound2, bound2)
    b2 = jax.random.uniform(k4, (1,), jnp.float32, -bound2, bound2)
    return w1, b1, w2, b2


if __name__ == "__main__":
    key = jax.random.PRNGKey(0)
    kx, kp, ks = jax.random.split(key, 3)

    n_hidden_neurons = 32
    batch = 512  # >= min_pallas_batch -> exercises the Pallas kernel (2 tiles)

    x = jax.random.normal(kx, (batch, 1), jnp.float32)
    w1, b1, w2, b2 = init_params(kp, n_hidden_neurons)

    # Pallas path.
    y = regression_net_forward(x, w1, b1, w2, b2)
    y = jax.block_until_ready(y)

    # Pure-JAX reference against the ORIGINAL (unfolded) params.
    y_ref = _jax_reference(x, w1, b1, w2, b2)
    assert y.shape == (batch, 1)
    assert jnp.allclose(y, y_ref, atol=1e-5, rtol=1e-5)

    # Small-batch fallback path (plain XLA) still matches the module semantics.
    x_small = jax.random.normal(ks, (8, 1), jnp.float32)
    y_small = jax.block_until_ready(
        regression_net_forward(x_small, w1, b1, w2, b2))
    assert jnp.allclose(y_small, _jax_reference(x_small, w1, b1, w2, b2),
                        atol=1e-5, rtol=1e-5)

    print("KERNEL_OK")
</pallas_src>

<mosaic_0001>
module attributes {stable_mosaic.version = 11 : i64} {
  func.func @regression_net_kernel(%arg0: i32, %arg1: memref<1x256xf32, #tpu.memory_space<vmem>>, %arg2: memref<32x3xf32, #tpu.memory_space<vmem>>, %arg3: memref<1x1xf32, #tpu.memory_space<smem>>, %arg4: memref<1x256xf32, #tpu.memory_space<vmem>>) attributes {dimension_semantics = [#tpu.dimension_semantics<parallel>], iteration_bounds = array<i64: 2>, scalar_prefetch = 0 : i64, scratch_operands = 0 : i64, tpu.core_type = #tpu.core_type<tc>, window_params = [{transform_indices = @transform_0, window_bounds = array<i64: 1, 256>}, {pipeline_mode = #tpu.pipeline_mode<synchronous>, transform_indices = @transform_1, window_bounds = array<i64: 32, 3>}, {transform_indices = @transform_2, window_bounds = array<i64: 1, 1>}, {transform_indices = @transform_3, window_bounds = array<i64: 1, 256>}]} {
    %c0 = arith.constant 0 : index
    %c0_0 = arith.constant 0 : index
    %0 = vector.load %arg1[%c0, %c0_0] : memref<1x256xf32, #tpu.memory_space<vmem>>, vector<1x256xf32>
    %c0_1 = arith.constant 0 : index
    %c0_2 = arith.constant 0 : index
    %1 = vector.load %arg2[%c0_1, %c0_2] : memref<32x3xf32, #tpu.memory_space<vmem>>, vector<32x1xf32>
    %c0_3 = arith.constant 0 : index
    %c1 = arith.constant 1 : index
    %2 = vector.load %arg2[%c0_3, %c1] : memref<32x3xf32, #tpu.memory_space<vmem>>, vector<32x1xf32>
    %c0_4 = arith.constant 0 : index
    %c2 = arith.constant 2 : index
    %3 = vector.load %arg2[%c0_4, %c2] : memref<32x3xf32, #tpu.memory_space<vmem>>, vector<32x1xf32>
    %4 = vector.broadcast %1 : vector<32x1xf32> to vector<32x256xf32>
    %5 = vector.broadcast %0 : vector<1x256xf32> to vector<32x256xf32>
    %6 = arith.mulf %4, %5 : vector<32x256xf32>
    %7 = vector.broadcast %2 : vector<32x1xf32> to vector<32x256xf32>
    %8 = arith.addf %6, %7 : vector<32x256xf32>
    %9 = math.tanh %8 : vector<32x256xf32>
    %10 = vector.broadcast %3 : vector<32x1xf32> to vector<32x256xf32>
    %11 = arith.mulf %10, %9 : vector<32x256xf32>
    %cst = arith.constant dense<0.000000e+00> : vector<256xf32>
    %12 = vector.multi_reduction <add>, %11, %cst [0] : vector<32x256xf32> to vector<256xf32>
    %13 = vector.shape_cast %12 : vector<256xf32> to vector<1x256xf32>
    %c0_5 = arith.constant 0 : index
    %c0_6 = arith.constant 0 : index
    %14 = memref.load %arg3[%c0_5, %c0_6] : memref<1x1xf32, #tpu.memory_space<smem>>
    %15 = vector.broadcast %14 : f32 to vector<1x256xf32>
    %16 = arith.addf %13, %15 : vector<1x256xf32>
    %c0_7 = arith.constant 0 : index
    %c0_8 = arith.constant 0 : index
    %17 = vector.load %arg4[%c0_7, %c0_8] : memref<1x256xf32, #tpu.memory_space<vmem>>, vector<1x256xf32>
    tpu.vector_store %arg4[%c0_7, %c0_8], %16 {strides = array<i32>} : memref<1x256xf32, #tpu.memory_space<vmem>>, vector<1x256xf32>,
    return
  }
  func.func @transform_0(%arg0: i32) -> (i32, i32) {
    %c0_i32 = arith.constant 0 : i32
    %c0_i32_0 = arith.constant 0 : i32
    return %c0_i32, %arg0 : i32, i32
  }
  func.func @transform_1(%arg0: i32) -> (i32, i32) {
    %c0_i32 = arith.constant 0 : i32
    %c0_i32_0 = arith.constant 0 : i32
    %c0_i32_1 = arith.constant 0 : i32
    return %c0_i32, %c0_i32_0 : i32, i32
  }
  func.func @transform_2(%arg0: i32) -> (i32, i32) {
    %c0_i32 = arith.constant 0 : i32
    %c0_i32_0 = arith.constant 0 : i32
    %c0_i32_1 = arith.constant 0 : i32
    return %c0_i32, %c0_i32_0 : i32, i32
  }
  func.func @transform_3(%arg0: i32) -> (i32, i32) {
    %c0_i32 = arith.constant 0 : i32
    %c0_i32_0 = arith.constant 0 : i32
    return %c0_i32, %arg0 : i32, i32
  }
}

</mosaic_0001>

<llo_original>
// kernel: regression_net_forward.1
$region0: #{regression_net_forward.1}
  #allocation0 [shape = 'u32[]', space=smem, size = 0x4, offset = 0x4, fixed_abs, tag = 'smem constant byte address 0x4 - core index']
  #allocation1 [shape = 'u32[144,128]{1,0:T(1,128)}', space=vmem, size = 0x12000, scoped, tag = 'internal scratch']
  #allocation2 [shape = 'f32[1,1]{1,0:T(1,128)S(6)}', space=smem, size = 0x200, scoped, tag = 'scoped memory for regression_net_forward.1']
  %s0 = inlined_call_operand.vmem [shape: f32[1,512], index: 0, kind: input, shape index: {}]
  %s1 = inlined_call_operand.vmem [shape: f32[32,3], index: 1, kind: input, shape index: {}]
  %s2 = inlined_call_operand.<no memory space> [shape: f32[1,1], index: 2, kind: input, shape index: {}]
  %s3 = inlined_call_operand.hbm [shape: f32[1,512], index: 3, kind: output, shape index: {}]
  %s4 = sld [smem:[#allocation0]]
  $region45: #{regression_net_forward.1} parent=0
    _
  %s6 = ssub.s32 1, %s4
  %s7 = scalar_select 0, %s6, %s4
  %8 = sst [smem:[#allocation2]] %s2
  $region1: #{regression_net_forward.1} parent=0
    #allocation3 [shape = 'u8[2048]{0}', space=vmem, size = 0x800, scoped, tag = 'output window, operand 0']
    #allocation4 [shape = 's32[2]{0}', space=sflag, size = 0x8, scoped, tag = 'scoped memory for regression_net_forward.1']
    %9 = vsyncpa [#allocation4], 0
    %s10 = scalar_lea.sflag [#allocation4], 1
    %11 = vsyncpa %s10, 0
    loop: start=0, step=1, limit=4
    $region2: #{regression_net_forward.1} parent=1 // loop_pre_header
      _
    $region3: #{regression_net_forward.1} parent=1 // loop_header
      %s13 = sphi 0, %s17
      %p14 = scmp.ge.s32.totalorder %s13, 4
      %s23 = sphi 0, %s25
      %s26 = sphi 0, %s23
      %s27 = sphi 0, %s26
      %s43 = sphi 0, %s27
      %s47 = sphi 0, %s47
      %s49 = sphi 0, %s47
      %s50 = sphi 0, %s49
      %s64 = sphi 0, %s50
      %s68 = sphi 0, %s68
      %s70 = sphi 0, %s68
      %s71 = sphi 0, %s70
      %s85 = sphi 0, %s71
      %s91 = sphi 0, %s93
      %s94 = sphi 0, %s91
      %s95 = sphi 0, %s94
      %s111 = sphi 0, %s95
    $region4: #{regression_net_forward.1} parent=1 // loop_header_branch
      %16 = sbr.rel (%p14) target = $region8
    $region5: #{regression_net_forward.1} parent=1 // loop_body
      %s18 = ssub.s32 %s13, 1
      %s19 = ssub.s32 %s13, 2
      %s20 = sadd.s32 %s13, 1
      %s21 = ssub.s32 %s13, %s20
      %p22 = scmp.eq.s32.totalorder %s21, 0
      %s24 = sadd.s32 %s23, 1
      %s25 = scalar_select %p22, %s23, %s24
      %p28 = pneg %p22
      %p29 = scmp.eq.s32.totalorder %s13, 1
      %p30 = por %p28, %p29
      %p31 = scmp.ne.s32.totalorder %s23, %s26
      %p32 = scmp.eq.s32.totalorder %s13, 0
      %p33 = por %p31, %p32
      %p34 = scmp.ne.s32.totalorder %s23, %s26
      %p35 = scmp.eq.s32.totalorder %s18, 1
      %p36 = por %p34, %p35
      %p37 = scmp.ne.s32.totalorder %s26, %s27
      %p38 = scmp.eq.s32.totalorder %s18, 0
      %p39 = por %p37, %p38
      %p40 = scmp.ne.s32.totalorder %s26, %s27
      %p41 = scmp.eq.s32.totalorder %s19, 1
      %p42 = por %p40, %p41
      %p44 = scmp.ne.s32.totalorder %s27, %s43
      %p45 = scmp.eq.s32.totalorder %s19, 0
      %p46 = por %p44, %p45
      %s48 = sadd.s32 %s47, 1
      %p51 = scmp.eq.s32.totalorder %s13, 1
      %p52 = scmp.ne.s32.totalorder %s47, %s49
      %p53 = scmp.eq.s32.totalorder %s13, 0
      %p54 = por %p52, %p53
      %p55 = scmp.ne.s32.totalorder %s47, %s49
      %p56 = scmp.eq.s32.totalorder %s18, 1
      %p57 = por %p55, %p56
      %p58 = scmp.ne.s32.totalorder %s49, %s50
      %p59 = scmp.eq.s32.totalorder %s18, 0
      %p60 = por %p58, %p59
      %p61 = scmp.ne.s32.totalorder %s49, %s50
      %p62 = scmp.eq.s32.totalorder %s19, 1
      %p63 = por %p61, %p62
      %p65 = scmp.ne.s32.totalorder %s50, %s64
      %p66 = scmp.eq.s32.totalorder %s19, 0
      %p67 = por %p65, %p66
      %s69 = sadd.s32 %s68, 1
      %p72 = scmp.eq.s32.totalorder %s13, 1
      %p73 = scmp.ne.s32.totalorder %s68, %s70
      %p74 = scmp.eq.s32.totalorder %s13, 0
      %p75 = por %p73, %p74
      %p76 = scmp.ne.s32.totalorder %s68, %s70
      %p77 = scmp.eq.s32.totalorder %s18, 1
      %p78 = por %p76, %p77
      %p79 = scmp.ne.s32.totalorder %s70, %s71
      %p80 = scmp.eq.s32.totalorder %s18, 0
      %p81 = por %p79, %p80
      %p82 = scmp.ne.s32.totalorder %s70, %s71
      %p83 = scmp.eq.s32.totalorder %s19, 1
      %p84 = por %p82, %p83
      %p86 = scmp.ne.s32.totalorder %s71, %s85
      %p87 = scmp.eq.s32.totalorder %s19, 0
      %p88 = por %p86, %p87
      %s89 = ssub.s32 %s13, %s20
      %p90 = scmp.eq.s32.totalorder %s89, 0
      %s92 = sadd.s32 %s91, 1
      %s93 = scalar_select %p90, %s91, %s92
      %p96 = pneg %p90
      %p97 = scmp.eq.s32.totalorder %s13, 1
      %p98 = por %p96, %p97
      %p99 = scmp.ne.s32.totalorder %s91, %s94
      %p100 = scmp.eq.s32.totalorder %s13, 0
      %p101 = por %p99, %p100
      %p102 = scmp.ne.s32.totalorder %s91, %s94
      %p103 = scmp.eq.s32.totalorder %s18, 1
      %p104 = por %p102, %p103
      %p105 = scmp.ne.s32.totalorder %s94, %s95
      %p106 = scmp.eq.s32.totalorder %s18, 0
      %p107 = por %p105, %p106
      %p108 = scmp.ne.s32.totalorder %s94, %s95
      %p109 = scmp.eq.s32.totalorder %s19, 1
      %p110 = por %p108, %p109
      %p112 = scmp.ne.s32.totalorder %s95, %s111
      %p113 = scmp.eq.s32.totalorder %s19, 0
      %p114 = por %p112, %p113
      %p115 = scmp.le.s32.totalorder 1, %s13
      %p116 = scmp.lt.s32.totalorder %s13, 3
      %p117 = pnand %p115, %p116
      %p118 = pneg %p117
      // Predicated region
      $region9: #{regression_net_forward.1} parent=5 // pred_check
        _
      $region10: #{regression_net_forward.1} parent=5 // pred_check_branch
        %120 = sbr.rel (%p117) target = $region12
      $region11: #{regression_net_forward.1} parent=5 // pred_region
        %s121 = ssub.s32 %s13, 1
        // Predicated region
        $region13: #{regression_net_forward.1} parent=11 // pred_check
          %p122 = pneg %p60
        $region14: #{regression_net_forward.1} parent=11 // pred_check_branch
          %124 = sbr.rel (%p122) target = $region16
        $region15: #{regression_net_forward.1} parent=11 // pred_region
          _
        $region16: #{regression_net_forward.1} parent=11 // pred_fallthru
          _
        // Predicated region
        $region17: #{regression_net_forward.1} parent=11 // pred_check
          %p125 = pneg %p81
        $region18: #{regression_net_forward.1} parent=11 // pred_check_branch
          %127 = sbr.rel (%p125) target = $region20
        $region19: #{regression_net_forward.1} parent=11 // pred_region
          _
        $region20: #{regression_net_forward.1} parent=11 // pred_fallthru
          _
      $region12: #{regression_net_forward.1} parent=5 // pred_fallthru
        _
      %p128 = scmp.lt.s32.totalorder %s13, 2
      // Predicated region
      $region21: #{regression_net_forward.1} parent=5 // pred_check
        %p129 = pneg %p128
      $region22: #{regression_net_forward.1} parent=5 // pred_check_branch
        %131 = sbr.rel (%p129) target = $region24
      $region23: #{regression_net_forward.1} parent=5 // pred_region
        // Predicated region
        $region25: #{regression_net_forward.1} parent=23 // pred_check
          %p132 = pneg %p33
        $region26: #{regression_net_forward.1} parent=23 // pred_check_branch
          %134 = sbr.rel (%p132) target = $region28
        $region27: #{regression_net_forward.1} parent=23 // pred_region
          %s135 = smul.u32 2, %s13
          %p136 = scmp.lt.s32.totalorder %s135, 3
          %s137 = scalar_select %p136, %s135, 3
          %s138 = scalar_lea.vmem %s0, %s137
          %s139 = smul.u32 2, %s13
        $region28: #{regression_net_forward.1} parent=23 // pred_fallthru
          _
      $region24: #{regression_net_forward.1} parent=5 // pred_fallthru
        _
      %p140 = scmp.le.s32.totalorder 1, %s13
      %p141 = scmp.lt.s32.totalorder %s13, 3
      %p142 = pnand %p140, %p141
      %p143 = pneg %p142
      // Predicated region
      $region29: #{regression_net_forward.1} parent=5 // pred_check
        _
      $region30: #{regression_net_forward.1} parent=5 // pred_check_branch
        %145 = sbr.rel (%p142) target = $region32
      $region31: #{regression_net_forward.1} parent=5 // pred_region
        %s146 = ssub.s32 %s13, 1
        %s147 = smul.u32 2, %s18
        %p148 = scmp.lt.s32.totalorder %s147, 3
        %s149 = scalar_select %p148, %s147, 3
        %s150 = scalar_lea.vmem %s0, %s149
        %p151 = pneg %p39
        %p152 = pneg %p36
        %p153 = pneg %p60
        %p154 = pneg %p57
        %p155 = pneg %p81
        %p156 = pneg %p78
        %p157 = pneg %p107
        %p158 = pneg %p104
        %s159 = sand.u32 %s94, 1
        %s160 = scalar_lea.sflag [#allocation4], %s159
        %s161 = sand.u32 %s94, 1
        %s162 = smul.addr %s161, 2
        %s163 = scalar_lea.vmem [#allocation3], %s162
        %s164 = smul.u32 2, %s18
        %p165 = scmp.lt.s32.totalorder %s164, 3
        %s166 = scalar_select %p165, %s164, 3
        %s167 = scalar_lea.vmem %s0, %s166
        %s168 = smul.u32 2, %s18
        %s169 = smul.u32 2, %s18
        %v170 = vld [vmem:[%s167] sm:$0x3]
        %v171 = vld [vmem:[%s1] sm:$0xff]
        %v172 = vld [vmem:[%s1 + $0x8] sm:$0xff]
        %v173 = vld [vmem:[%s1 + $0x10] sm:$0xff]
        %v174 = vld [vmem:[%s1 + $0x18] sm:$0xff]
        %176 = vset.pattern.permute.xlu0 0
        %177 = vperm.xlu0 %176, %v171
        %v178 = vpop.permute.xlu0 %177
        %181 = vset.pattern.permute.xlu0 0
        %182 = vperm.xlu0 %181, %v172
        %v183 = vpop.permute.xlu0 %182
        %186 = vset.pattern.permute.xlu0 0
        %187 = vperm.xlu0 %186, %v173
        %v188 = vpop.permute.xlu0 %187
        %191 = vset.pattern.permute.xlu0 0
        %192 = vperm.xlu0 %191, %v174
        %v193 = vpop.permute.xlu0 %192
        %v196 = vlaneseq
        %v197 = vshrl.u32 %v196, 7
        %v198 = vsub.s32 0, %v197
        %v199 = vrot.slane %v170, %v198
        %v200 = vlaneseq
        %v201 = vshrl.u32 %v200, 7
        %v202 = vsub.s32 1, %v201
        %v203 = vrot.slane %v170, %v202
        %v206 = vmul.f32 %v178, %v199
        %v207 = vmul.f32 %v178, %v203
        %v208 = vmul.f32 %v183, %v199
        %v209 = vmul.f32 %v183, %v203
        %v210 = vmul.f32 %v188, %v199
        %v211 = vmul.f32 %v188, %v203
        %v212 = vmul.f32 %v193, %v199
        %v213 = vmul.f32 %v193, %v203
        %214 = vset.pattern.permute.xlu0 1
        %215 = vperm.xlu0 %214, %v171
        %v216 = vpop.permute.xlu0 %215
        %218 = vset.pattern.permute.xlu0 1
        %219 = vperm.xlu0 %218, %v172
        %v220 = vpop.permute.xlu0 %219
        %222 = vset.pattern.permute.xlu0 1
        %223 = vperm.xlu0 %222, %v173
        %v224 = vpop.permute.xlu0 %223
        %226 = vset.pattern.permute.xlu0 1
        %227 = vperm.xlu0 %226, %v174
        %v228 = vpop.permute.xlu0 %227
        %v230 = vadd.f32 %v206, %v216
        %v231 = vadd.f32 %v207, %v216
        %v232 = vadd.f32 %v208, %v220
        %v233 = vadd.f32 %v209, %v220
        %v234 = vadd.f32 %v210, %v224
        %v235 = vadd.f32 %v211, %v224
        %v236 = vadd.f32 %v212, %v228
        %v237 = vadd.f32 %v213, %v228
        %v238 = vtanh.pop %v230
        %v239 = vtanh.pop %v231
        %v240 = vtanh.pop %v232
        %v241 = vtanh.pop %v233
        %v242 = vtanh.pop %v234
        %v243 = vtanh.pop %v235
        %v244 = vtanh.pop %v236
        %v245 = vtanh.pop %v237
        %246 = vset.pattern.permute.xlu0 2
        %247 = vperm.xlu0 %246, %v171
        %v248 = vpop.permute.xlu0 %247
        %250 = vset.pattern.permute.xlu0 2
        %251 = vperm.xlu0 %250, %v172
        %v252 = vpop.permute.xlu0 %251
        %254 = vset.pattern.permute.xlu0 2
        %255 = vperm.xlu0 %254, %v173
        %v256 = vpop.permute.xlu0 %255
        %258 = vset.pattern.permute.xlu0 2
        %259 = vperm.xlu0 %258, %v174
        %v260 = vpop.permute.xlu0 %259
        %v262 = vmul.f32 %v248, %v238
        %v263 = vmul.f32 %v248, %v239
        %v264 = vmul.f32 %v252, %v240
        %v265 = vmul.f32 %v252, %v241
        %v266 = vmul.f32 %v256, %v242
        %v267 = vmul.f32 %v256, %v243
        %v268 = vmul.f32 %v260, %v244
        %v269 = vmul.f32 %v260, %v245
        %v270 = vadd.f32 %v262, %v264
        %v271 = vadd.f32 %v270, %v266
        %v272 = vadd.f32 %v271, %v268
        %v273 = vrot.slane %v272, 4
        %v274 = vadd.f32 %v272, %v273
        %v275 = vrot.slane %v274, 2
        %v276 = vadd.f32 %v274, %v275
        %v277 = vrot.slane %v276, 1
        %v278 = vadd.f32 %v276, %v277
        %v279 = vadd.f32 %v263, %v265
        %v280 = vadd.f32 %v279, %v267
        %v281 = vadd.f32 %v280, %v269
        %v282 = vrot.slane %v281, 4
        %v283 = vadd.f32 %v281, %v282
        %v284 = vrot.slane %v283, 2
        %v285 = vadd.f32 %v283, %v284
        %v286 = vrot.slane %v285, 1
        %v287 = vadd.f32 %v285, %v286
        %s288 = sld [smem:[#allocation2]]
        %v289 = vstv %s288
        %v290 = vadd.f32 %v278, %v289
        %v291 = vadd.f32 %v287, %v289
        %v294 = vcombine.low %v290, %v291
        %v296 = vunpack.c.l.s4 1966171168
        %v297 = vunpack.c.0.s8 %v296
        %v298 = vlaneseq
        %v299 = vshrl.u32 %v298, 7
        %v300 = vsub.s32 %v297, %v299
        %v301 = vrot.slane %v294, %v300
        %v303 = vunpack.c.l.s4 1966171168
        %v304 = vunpack.c.0.s8 %v303
        %v305 = vlaneseq
        %v306 = vshrl.u32 %v305, 7
        %v307 = vsub.s32 %v304, %v306
        %v308 = vrot.slane %v301, %v307
        %v310 = vlaneseq
        %vm311 = vcmp.ge.s32.totalorder %v310, 0
        %vm312 = vcmp.lt.s32.totalorder %v310, 256
        %vm313 = vmand %vm311, %vm312
        %314 = vst.msk [vmem:[%s163] sm:$0x3] %vm313, %v308
        %s315 = sand.u32 %s94, 1
        %s316 = scalar_lea.sflag [#allocation4], %s315
        %s317 = sand.u32 %s94, 1
        %s318 = smul.addr %s317, 2
        %s319 = scalar_lea.vmem [#allocation3], %s318
        // Predicated region
        $region33: #{regression_net_forward.1} parent=31 // pred_check
          %p320 = pneg %p104
        $region34: #{regression_net_forward.1} parent=31 // pred_check_branch
          %322 = sbr.rel (%p320) target = $region36
        $region35: #{regression_net_forward.1} parent=31 // pred_region
          %s323 = smul.u32 2, %s18
          %s325 = ssub.s32 32, 32
          %326 = vsyncadd %s316, %s325
          %s327 = smul.addr %s323, 16
          %s328 = scalar_lea.hbm %s3, %s327
          %s330 = sshll.u32 %s319, 4
          %s331 = int_to_ptr.vmem [resolvable:$true] %s330
          %333 = dma.vmem_to_hbm [thread:$0]  %s331, 32, %s328, %s316
        $region36: #{regression_net_forward.1} parent=31 // pred_fallthru
          _
      $region32: #{regression_net_forward.1} parent=5 // pred_fallthru
        _
      %p334 = scmp.le.s32.totalorder 2, %s13
      // Predicated region
      $region37: #{regression_net_forward.1} parent=5 // pred_check
        %p335 = pneg %p334
      $region38: #{regression_net_forward.1} parent=5 // pred_check_branch
        %337 = sbr.rel (%p335) target = $region40
      $region39: #{regression_net_forward.1} parent=5 // pred_region
        %s338 = ssub.s32 %s13, 2
        // Predicated region
        $region41: #{regression_net_forward.1} parent=39 // pred_check
          %p339 = pneg %p110
        $region42: #{regression_net_forward.1} parent=39 // pred_check_branch
          %341 = sbr.rel (%p339) target = $region44
        $region43: #{regression_net_forward.1} parent=39 // pred_region
          %s342 = sand.u32 %s95, 1
          %s343 = scalar_lea.sflag [#allocation4], %s342
          %s344 = sand.u32 %s95, 1
          %s345 = smul.addr %s344, 2
          %s346 = scalar_lea.vmem [#allocation3], %s345
          %347 = dma.done %s343, 32
        $region44: #{regression_net_forward.1} parent=39 // pred_fallthru
          _
      $region40: #{regression_net_forward.1} parent=5 // pred_fallthru
        _
    $region6: #{regression_net_forward.1} parent=1 // loop_footer
      %s17 = sadd.s32 1, %s13
    $region7: #{regression_net_forward.1} parent=1 // loop_footer_branch
      %12 = sbr.rel target = $region3
    $region8: #{regression_net_forward.1} parent=1 // loop_exit
      _
    %348 = vsyncpa [#allocation4], 1
    %s349 = scalar_lea.sflag [#allocation4], 1
    %350 = vsyncpa %s349, 1

</llo_original>
